<compile_context>
chip_gen: v7x
topology: tpu7x:2x2x1
jax: 0.10.0
libtpu: 0.0.40
codegen_flags: <defaults>
</compile_context>

<pallas_src>
from types import SimpleNamespace

import numpy as np
import jax
import jax.numpy as jnp
from jax.experimental import pallas as pl
from jax.experimental.pallas import tpu as pltpu

_LANES = 128
_BETA = 100.0  # Softplus beta of the PyTorch module


def _round_up(n, m):
    return ((n + m - 1) // m) * m


def _device_kind():
    try:
        return jax.devices()[0].device_kind.lower()
    except Exception:
        return ""


# --------------------------------------------------------------------------- #
# Host-side parameter packing (pure data layout + scale folding, no forward   #
# math on activations happens here).                                          #
# --------------------------------------------------------------------------- #
def pack_context_fcnet_params(params, *, data_dim, hid_dim, input_dim, mlp_dims):
    """Pack every weight/bias into one bf16 weight slab + one small f32 bias slab.

    Scale folding (softplus100(v) = softplus(100*v)/100):
      * any Linear feeding a Softplus(beta=100): W, b  scaled by 100
      * any Linear consuming that activation   : W     scaled by 1/100
    so the kernel only evaluates the unscaled, numerically-stable softplus.
    """
    s = _BETA
    m0, m1 = tuple(map(int, mlp_dims.split("-")))
    d, hd, idim = data_dim, hid_dim, input_dim
    assert 3 * idim <= _LANES, "fused embed layout needs 3*input_dim <= 128"
    assert idim % 16 == 0, "input_dim must be a multiple of 16 (bf16 sublane tiling)"
    assert m0 <= _LANES and m1 <= _LANES and d <= _LANES

    kin = d + hd + 1                         # packed [x | h | t] feature count
    cm_idx = kin                             # context-mask lives in the next lane
    kp = max(16, _round_up(kin + 1, 16))     # input slab width, bf16 row-tile aligned
    out_lanes = max(8, _round_up(d, 8))      # narrow lane-dense output width

    f = lambda a: np.asarray(a, np.float32)

    # ---- fused EmbedFC layer 1: block diagonal over the packed [x|h|t|cm|pad] input.
    #      Zero rows for the cm / padding columns kill them in the matmul.
    w1 = np.zeros((kp, _LANES), np.float32)
    w1[0:d,               0:idim]            = f(params["pe_w1"])     # x  -> pe hidden
    w1[d:d + hd,          idim:2 * idim]     = f(params["ce_w1"])     # h  -> ce hidden
    w1[d + hd:d + hd + 1, 2 * idim:3 * idim] = f(params["te_w1"])     # t  -> te hidden
    b1 = np.zeros((1, _LANES), np.float32)
    b1[0, 0:idim]            = f(params["pe_b1"]).reshape(-1)
    b1[0, idim:2 * idim]     = f(params["ce_b1"]).reshape(-1)
    b1[0, 2 * idim:3 * idim] = f(params["te_b1"]).reshape(-1)
    w1 *= s
    b1 *= s                                   # fold beta=100 pre-scale

    # ---- fused EmbedFC layer 2: block diagonal, consumes softplus(.)/100
    w2 = np.zeros((_LANES, _LANES), np.float32)
    w2[0:idim,            0:idim]            = f(params["pe_w2"])
    w2[idim:2 * idim,     idim:2 * idim]     = f(params["ce_w2"])
    w2[2 * idim:3 * idim, 2 * idim:3 * idim] = f(params["te_w2"])
    w2 *= (1.0 / s)                           # fold /100 post-scale
    b2 = np.zeros((1, _LANES), np.float32)
    b2[0, 0:idim]            = f(params["pe_b2"]).reshape(-1)
    b2[0, idim:2 * idim]     = f(params["ce_b2"]).reshape(-1)
    b2[0, 2 * idim:3 * idim] = f(params["te_b2"]).reshape(-1)

    # ---- main MLP: Linear(idim,m0) -> SP -> Linear(m0,m1) -> SP -> Linear(m1,d)
    l0 = np.zeros((idim, _LANES), np.float32)
    l0[:, 0:m0] = f(params["l0_w"]) * s
    bl0 = np.zeros((1, _LANES), np.float32)
    bl0[0, 0:m0] = f(params["l0_b"]).reshape(-1) * s
    l1 = np.zeros((_LANES, _LANES), np.float32)          # rows >= m0 zero: kill garbage lanes
    l1[0:m0, 0:m1] = f(params["l1_w"])                    # (*100 pre) * (1/100 post) = 1
    bl1 = np.zeros((1, _LANES), np.float32)
    bl1[0, 0:m1] = f(params["l1_b"]).reshape(-1) * s
    l2 = np.zeros((_LANES, _LANES), np.float32)           # rows >= m1 zero: kill garbage lanes
    l2[0:m1, 0:d] = f(params["l2_w"]) * (1.0 / s)         # only lanes 0:d are real output
    bl2 = np.zeros((1, _LANES), np.float32)
    bl2[0, 0:d] = f(params["l2_b"]).reshape(-1)

    w_slab = np.concatenate([w1, w2, l0, l1, l2], axis=0)     # [kp+128+idim+256, 128]
    # One bias row per 8-row tile so every in-kernel read starts at a tile boundary.
    b_slab = np.zeros((5 * 8, _LANES), np.float32)            # [40, 128]
    for r, b in enumerate([b1, b2, bl0, bl1, bl2]):
        b_slab[8 * r] = b[0]

    layout = SimpleNamespace(
        d=d, hdim=hd, idim=idim, m0=m0, m1=m1,
        kp=kp, cm_idx=cm_idx, out_lanes=out_lanes,
        r_w1=0,                      n_w1=kp,
        r_w2=kp,                     n_w2=_LANES,
        r_l0=kp + _LANES,            n_l0=idim,
        r_l1=kp + _LANES + idim,     n_l1=_LANES,
        r_l2=kp + 2 * _LANES + idim, n_l2=_LANES,
        b_w1=0, b_w2=8, b_l0=16, b_l1=24, b_l2=32,
        w_rows=w_slab.shape[0], b_rows=b_slab.shape[0], lanes=_LANES)
    return {"w": jnp.asarray(w_slab, jnp.bfloat16),   # bf16 weight slab (half DMA/VMEM)
            "b": jnp.asarray(b_slab, jnp.float32),    # f32 biases (added post-accumulate)
            "layout": layout}


# --------------------------------------------------------------------------- #
# Kernel                                                                      #
# --------------------------------------------------------------------------- #
def _make_kernel(L, elem_dtype):
    """Kernel closed over the static slab layout L and the elementwise dtype."""

    def kernel(inp_ref, w_ref, b_ref, out_ref):
        f32 = jnp.float32

        # plain softplus; the beta=100 scales are folded into the packed weights.
        # elem_dtype = bf16 on v6e/v7x (bf16 EUP/VPU), f32 on v5e / unknown.
        def softplus(u):
            v = u.astype(elem_dtype)
            return jnp.maximum(v, 0.0) + jnp.log1p(jnp.exp(-jnp.abs(v)))

        def dot(a, w):  # single-pass bf16 MXU, f32 accumulate
            return jnp.dot(a.astype(jnp.bfloat16), w, preferred_element_type=f32)

        def wrow(r, n):
            return w_ref[r:r + n, :]

        def brow(r):
            return b_ref[r:r + 1, :]

        # Single packed input slab [Bt, kp] = [x | h | t | cm | 0...].
        inp = inp_ref[...]                                      # f32
        cm = inp[:, L.cm_idx:L.cm_idx + 1]                      # [Bt, 1]
        neg_mask = cm - 1.0                                     # -(1 - cm)
        col = jax.lax.broadcasted_iota(jnp.int32, (1, L.kp), 1)
        h_sel = (col >= L.d) & (col < L.d + L.hdim)             # only the h columns
        xin = jnp.where(h_sel, inp * neg_mask, inp)             # [Bt, kp] = [x | h*m | t | cm | 0]
        # (cm / pad columns feed zero rows of w1, so they contribute nothing.)

        # fused EmbedFC layer 1 (block diagonal), folded beta pre-scale
        u = dot(xin, wrow(L.r_w1, L.n_w1)) + brow(L.b_w1)
        a = softplus(u)                                         # [Bt, 128]
        # fused EmbedFC layer 2 (block diagonal), folded 1/beta post-scale
        e = dot(a, wrow(L.r_w2, L.n_w2)) + brow(L.b_w2)         # [Bt, 128] f32

        xe = e[:, 0:L.idim]                                     # pointembed(x)
        hemb = e[:, L.idim:2 * L.idim]                          # contextembed(h*mask)
        temb = e[:, 2 * L.idim:3 * L.idim]                      # timeembed(t)
        z = xe * hemb + temb                                    # [Bt, idim]

        # main MLP head (garbage lanes are killed by zero weight rows)
        u = dot(z, wrow(L.r_l0, L.n_l0)) + brow(L.b_l0)
        hdd = softplus(u)                                       # [Bt, 128]
        u = dot(hdd, wrow(L.r_l1, L.n_l1)) + brow(L.b_l1)
        hdd = softplus(u)                                       # [Bt, 128]
        out = dot(hdd, wrow(L.r_l2, L.n_l2)) + brow(L.b_l2)     # [Bt, 128] f32
        # narrow, lane-dense store: only the first out_lanes lanes hit HBM
        out_ref[...] = out[:, :L.out_lanes].astype(out_ref.dtype)

    return kernel


# --------------------------------------------------------------------------- #
# Wrapper                                                                     #
# --------------------------------------------------------------------------- #
def context_fcnet_forward(x, h, t, context_mask, packed, *, block_b=1024):
    L = packed["layout"]
    B = x.shape[0]
    f32 = jnp.float32
    assert block_b % 8 == 0, "block_b must be a multiple of 8 (sublane constraint)"

    kind = _device_kind()
    # bf16 elementwise/softplus only where the VPU/EUP have a bf16 path (v6e / v7x).
    elem_dtype = jnp.bfloat16 if ("v6" in kind or "v7" in kind) else jnp.float32
    num_tc = 2 if "v7" in kind else 1

    # batch tiling: pad B to a multiple of the tile (pad rows are sliced off below)
    bt = min(block_b, _round_up(B, 8))
    if num_tc > 1:
        # ensure the "parallel" batch grid spans both v7x TensorCores
        bt = min(bt, max(8, _round_up(-(-B // num_tc), 8)))
    Bp = _round_up(B, bt)

    # ONE packed activation slab [x | h | t | cm | 0...], built with a single concat + pad.
    feat = jnp.concatenate(
        [x.astype(f32).reshape(B, -1),
         h.astype(f32).reshape(B, -1),
         t.astype(f32).reshape(B, -1),
         context_mask.astype(f32).reshape(B, -1)], axis=1)        # [B, d+hd+2]
    inp = jnp.pad(feat, ((0, Bp - B), (0, L.kp - feat.shape[1])))  # [Bp, kp]

    grid = (Bp // bt,)
    out = pl.pallas_call(
        _make_kernel(L, elem_dtype),
        out_shape=jax.ShapeDtypeStruct((Bp, L.out_lanes), f32),
        grid=grid,
        in_specs=[
            pl.BlockSpec((bt, L.kp), lambda i: (i, 0)),             # packed activations
            pl.BlockSpec((L.w_rows, L.lanes), lambda i: (0, 0)),    # bf16 weight slab (const)
            pl.BlockSpec((L.b_rows, L.lanes), lambda i: (0, 0)),    # f32 bias slab   (const)
        ],
        out_specs=pl.BlockSpec((bt, L.out_lanes), lambda i: (i, 0)),  # narrow [Bt, 8] store
        compiler_params=pltpu.CompilerParams(
            dimension_semantics=("parallel",)),                     # v7x: 2 TCs split the batch
    )(inp, packed["w"], packed["b"])

    return out[:B, :L.d]


# --------------------------------------------------------------------------- #
# Pure-JAX reference (faithful to the PyTorch module, unfused / unfolded)     #
# --------------------------------------------------------------------------- #
def context_fcnet_reference(x, h, t, context_mask, p):
    P = jax.lax.Precision.HIGHEST

    def sp100(v):  # torch.nn.Softplus(beta=100, threshold=20)
        z = _BETA * v
        return jnp.where(z > 20.0, v, jnp.log1p(jnp.exp(jnp.minimum(z, 20.0))) / _BETA)

    def embed(v, w1, b1, w2, b2):
        a = sp100(jnp.dot(v, w1, precision=P) + b1)
        return jnp.dot(a, w2, precision=P) + b2

    xe = embed(x, p["pe_w1"], p["pe_b1"], p["pe_w2"], p["pe_b2"])
    mask = -1.0 * (1.0 - context_mask)          # repeat(1, hid_dim) == broadcast
    hm = h * mask
    hemb = embed(hm, p["ce_w1"], p["ce_b1"], p["ce_w2"], p["ce_b2"])
    temb = embed(t, p["te_w1"], p["te_b1"], p["te_w2"], p["te_b2"])
    z = sp100(jnp.dot(hemb * xe + temb, p["l0_w"], precision=P) + p["l0_b"])
    z = sp100(jnp.dot(z, p["l1_w"], precision=P) + p["l1_b"])
    return jnp.dot(z, p["l2_w"], precision=P) + p["l2_b"]


# --------------------------------------------------------------------------- #
# Demo / self-test                                                            #
# --------------------------------------------------------------------------- #
if __name__ == "__main__":
    data_dim = 2
    hid_dim = 4
    input_dim = 32
    mlp_dims = "64-64"
    B = 8

    m0, m1 = tuple(map(int, mlp_dims.split("-")))

    key = jax.random.PRNGKey(0)
    keys = iter(jax.random.split(key, 64))

    def mk(shape, scale=0.2):
        return (scale * jax.random.normal(next(keys), shape)).astype(jnp.float32)

    params = {
        "pe_w1": mk((data_dim, input_dim)), "pe_b1": mk((1, input_dim)),
        "pe_w2": mk((input_dim, input_dim)), "pe_b2": mk((1, input_dim)),
        "ce_w1": mk((hid_dim, input_dim)), "ce_b1": mk((1, input_dim)),
        "ce_w2": mk((input_dim, input_dim)), "ce_b2": mk((1, input_dim)),
        "te_w1": mk((1, input_dim)), "te_b1": mk((1, input_dim)),
        "te_w2": mk((input_dim, input_dim)), "te_b2": mk((1, input_dim)),
        "l0_w": mk((input_dim, m0)), "l0_b": mk((1, m0)),
        "l1_w": mk((m0, m1)), "l1_b": mk((1, m1)),
        "l2_w": mk((m1, data_dim)), "l2_b": mk((1, data_dim)),
    }

    x = mk((B, data_dim), scale=1.0)
    h = mk((B, hid_dim), scale=1.0)
    t = jnp.abs(mk((B, 1), scale=1.0))
    context_mask = (jax.random.uniform(next(keys), (B, 1)) > 0.5).astype(jnp.float32)

    packed = pack_context_fcnet_params(
        params, data_dim=data_dim, hid_dim=hid_dim, input_dim=input_dim, mlp_dims=mlp_dims)

    out = context_fcnet_forward(x, h, t, context_mask, packed)
    out = jax.block_until_ready(out)

    ref = context_fcnet_reference(x, h, t, context_mask, params)
    assert out.shape == (B, data_dim)

    # Tolerance note: the kernel evaluates an algebraically identical (block-diagonal
    # fused, beta-folded) expression with bf16 MXU operands/weights and (on v6e/v7x)
    # bf16 transcendentals; agreement with the high-precision f32 reference is expected
    # at the ~1e-2 level.  Structural bugs would produce O(0.1-1) errors.
    max_err = float(jnp.max(jnp.abs(out - ref)))
    assert max_err < 3e-2, f"mismatch vs. pure-JAX reference: max|diff|={max_err}"

    print("KERNEL_OK")
</pallas_src>

<mosaic_0001>
module attributes {stable_mosaic.version = 11 : i64} {
  func.func @kernel(%arg0: i32, %arg1: memref<8x16xf32, #tpu.memory_space<vmem>>, %arg2: memref<432x128xbf16, #tpu.memory_space<vmem>>, %arg3: memref<40x128xf32, #tpu.memory_space<vmem>>, %arg4: memref<8x8xf32, #tpu.memory_space<vmem>>) attributes {dimension_semantics = [#tpu.dimension_semantics<parallel>], iteration_bounds = array<i64: 1>, scalar_prefetch = 0 : i64, scratch_operands = 0 : i64, tpu.core_type = #tpu.core_type<tc>, window_params = [{transform_indices = @transform_0, window_bounds = array<i64: 8, 16>}, {pipeline_mode = #tpu.pipeline_mode<synchronous>, transform_indices = @transform_1, window_bounds = array<i64: 432, 128>}, {pipeline_mode = #tpu.pipeline_mode<synchronous>, transform_indices = @transform_2, window_bounds = array<i64: 40, 128>}, {transform_indices = @transform_3, window_bounds = array<i64: 8, 8>}]} {
    %c0 = arith.constant 0 : index
    %c0_0 = arith.constant 0 : index
    %0 = vector.load %arg1[%c0, %c0_0] : memref<8x16xf32, #tpu.memory_space<vmem>>, vector<8x16xf32>
    %1 = vector.extract_strided_slice %0 {offsets = [0, 7], sizes = [8, 1], strides = [1, 1]} : vector<8x16xf32> to vector<8x1xf32>
    %cst = arith.constant 1.000000e+00 : f32
    %2 = vector.broadcast %cst : f32 to vector<8x1xf32>
    %3 = arith.subf %1, %2 : vector<8x1xf32>
    %4 = tpu.iota {dimensions = array<i32: 1>} : vector<1x16xi32>
    %c2_i32 = arith.constant 2 : i32
    %5 = vector.broadcast %c2_i32 : i32 to vector<1x16xi32>
    %6 = arith.cmpi sge, %4, %5 : vector<1x16xi32>
    %c6_i32 = arith.constant 6 : i32
    %7 = vector.broadcast %c6_i32 : i32 to vector<1x16xi32>
    %8 = arith.cmpi slt, %4, %7 : vector<1x16xi32>
    %9 = arith.andi %6, %8 : vector<1x16xi1>
    %10 = vector.broadcast %3 : vector<8x1xf32> to vector<8x16xf32>
    %11 = arith.mulf %0, %10 : vector<8x16xf32>
    %12 = vector.shape_cast %9 : vector<1x16xi1> to vector<1x16xi1>
    %13 = vector.broadcast %12 : vector<1x16xi1> to vector<8x16xi1>
    %14 = arith.select %13, %11, %0 : vector<8x16xi1>, vector<8x16xf32>
    %c0_1 = arith.constant 0 : index
    %c0_2 = arith.constant 0 : index
    %15 = vector.load %arg2[%c0_1, %c0_2] : memref<432x128xbf16, #tpu.memory_space<vmem>>, vector<16x128xbf16>
    %16 = arith.truncf %14 : vector<8x16xf32> to vector<8x16xbf16>
    %cst_3 = arith.constant dense<0.000000e+00> : vector<8x128xf32>
    %17 = tpu.matmul %16, %15, %cst_3 {dimension_numbers = #tpu.dot_dimension_numbers<[1], [0], [0], [1], [0, 0, 1, 1], [], []>} : vector<8x16xbf16>, vector<16x128xbf16>, vector<8x128xf32> -> vector<8x128xf32>
    %c0_4 = arith.constant 0 : index
    %c0_5 = arith.constant 0 : index
    %18 = vector.load %arg3[%c0_4, %c0_5] : memref<40x128xf32, #tpu.memory_space<vmem>>, vector<1x128xf32>
    %19 = vector.broadcast %18 : vector<1x128xf32> to vector<8x128xf32>
    %20 = arith.addf %17, %19 : vector<8x128xf32>
    %cst_6 = arith.constant 0.000000e+00 : f32
    %21 = vector.broadcast %cst_6 : f32 to vector<8x128xf32>
    %22 = arith.maximumf %20, %21 : vector<8x128xf32>
    %23 = math.absf %20 : vector<8x128xf32>
    %cst_7 = arith.constant 0.000000e+00 : f32
    %24 = vector.broadcast %cst_7 : f32 to vector<8x128xf32>
    %25 = arith.subf %24, %23 : vector<8x128xf32>
    %26 = math.exp %25 : vector<8x128xf32>
    %27 = math.log1p %26 : vector<8x128xf32>
    %28 = arith.addf %22, %27 : vector<8x128xf32>
    %c16 = arith.constant 16 : index
    %c0_8 = arith.constant 0 : index
    %29 = vector.load %arg2[%c16, %c0_8] : memref<432x128xbf16, #tpu.memory_space<vmem>>, vector<128x128xbf16>
    %30 = arith.truncf %28 : vector<8x128xf32> to vector<8x128xbf16>
    %cst_9 = arith.constant dense<0.000000e+00> : vector<8x128xf32>
    %31 = tpu.matmul %30, %29, %cst_9 {dimension_numbers = #tpu.dot_dimension_numbers<[1], [0], [0], [1], [0, 0, 1, 1], [], []>} : vector<8x128xbf16>, vector<128x128xbf16>, vector<8x128xf32> -> vector<8x128xf32>
    %c8 = arith.constant 8 : index
    %c0_10 = arith.constant 0 : index
    %32 = vector.load %arg3[%c8, %c0_10] : memref<40x128xf32, #tpu.memory_space<vmem>>, vector<1x128xf32>
    %33 = vector.broadcast %32 : vector<1x128xf32> to vector<8x128xf32>
    %34 = arith.addf %31, %33 : vector<8x128xf32>
    %35 = vector.extract_strided_slice %34 {offsets = [0, 0], sizes = [8, 32], strides = [1, 1]} : vector<8x128xf32> to vector<8x32xf32>
    %36 = vector.extract_strided_slice %34 {offsets = [0, 32], sizes = [8, 32], strides = [1, 1]} : vector<8x128xf32> to vector<8x32xf32>
    %37 = vector.extract_strided_slice %34 {offsets = [0, 64], sizes = [8, 32], strides = [1, 1]} : vector<8x128xf32> to vector<8x32xf32>
    %38 = arith.mulf %35, %36 : vector<8x32xf32>
    %39 = arith.addf %38, %37 : vector<8x32xf32>
    %c144 = arith.constant 144 : index
    %c0_11 = arith.constant 0 : index
    %40 = vector.load %arg2[%c144, %c0_11] : memref<432x128xbf16, #tpu.memory_space<vmem>>, vector<32x128xbf16>
    %41 = arith.truncf %39 : vector<8x32xf32> to vector<8x32xbf16>
    %cst_12 = arith.constant dense<0.000000e+00> : vector<8x128xf32>
    %42 = tpu.matmul %41, %40, %cst_12 {dimension_numbers = #tpu.dot_dimension_numbers<[1], [0], [0], [1], [0, 0, 1, 1], [], []>} : vector<8x32xbf16>, vector<32x128xbf16>, vector<8x128xf32> -> vector<8x128xf32>
    %c16_13 = arith.constant 16 : index
    %c0_14 = arith.constant 0 : index
    %43 = vector.load %arg3[%c16_13, %c0_14] : memref<40x128xf32, #tpu.memory_space<vmem>>, vector<1x128xf32>
    %44 = vector.broadcast %43 : vector<1x128xf32> to vector<8x128xf32>
    %45 = arith.addf %42, %44 : vector<8x128xf32>
    %cst_15 = arith.constant 0.000000e+00 : f32
    %46 = vector.broadcast %cst_15 : f32 to vector<8x128xf32>
    %47 = arith.maximumf %45, %46 : vector<8x128xf32>
    %48 = math.absf %45 : vector<8x128xf32>
    %cst_16 = arith.constant 0.000000e+00 : f32
    %49 = vector.broadcast %cst_16 : f32 to vector<8x128xf32>
    %50 = arith.subf %49, %48 : vector<8x128xf32>
    %51 = math.exp %50 : vector<8x128xf32>
    %52 = math.log1p %51 : vector<8x128xf32>
    %53 = arith.addf %47, %52 : vector<8x128xf32>
    %c176 = arith.constant 176 : index
    %c0_17 = arith.constant 0 : index
    %54 = vector.load %arg2[%c176, %c0_17] : memref<432x128xbf16, #tpu.memory_space<vmem>>, vector<128x128xbf16>
    %55 = arith.truncf %53 : vector<8x128xf32> to vector<8x128xbf16>
    %cst_18 = arith.constant dense<0.000000e+00> : vector<8x128xf32>
    %56 = tpu.matmul %55, %54, %cst_18 {dimension_numbers = #tpu.dot_dimension_numbers<[1], [0], [0], [1], [0, 0, 1, 1], [], []>} : vector<8x128xbf16>, vector<128x128xbf16>, vector<8x128xf32> -> vector<8x128xf32>
    %c24 = arith.constant 24 : index
    %c0_19 = arith.constant 0 : index
    %57 = vector.load %arg3[%c24, %c0_19] : memref<40x128xf32, #tpu.memory_space<vmem>>, vector<1x128xf32>
    %58 = vector.broadcast %57 : vector<1x128xf32> to vector<8x128xf32>
    %59 = arith.addf %56, %58 : vector<8x128xf32>
    %cst_20 = arith.constant 0.000000e+00 : f32
    %60 = vector.broadcast %cst_20 : f32 to vector<8x128xf32>
    %61 = arith.maximumf %59, %60 : vector<8x128xf32>
    %62 = math.absf %59 : vector<8x128xf32>
    %cst_21 = arith.constant 0.000000e+00 : f32
    %63 = vector.broadcast %cst_21 : f32 to vector<8x128xf32>
    %64 = arith.subf %63, %62 : vector<8x128xf32>
    %65 = math.exp %64 : vector<8x128xf32>
    %66 = math.log1p %65 : vector<8x128xf32>
    %67 = arith.addf %61, %66 : vector<8x128xf32>
    %c304 = arith.constant 304 : index
    %c0_22 = arith.constant 0 : index
    %68 = vector.load %arg2[%c304, %c0_22] : memref<432x128xbf16, #tpu.memory_space<vmem>>, vector<128x128xbf16>
    %69 = arith.truncf %67 : vector<8x128xf32> to vector<8x128xbf16>
    %cst_23 = arith.constant dense<0.000000e+00> : vector<8x128xf32>
    %70 = tpu.matmul %69, %68, %cst_23 {dimension_numbers = #tpu.dot_dimension_numbers<[1], [0], [0], [1], [0, 0, 1, 1], [], []>} : vector<8x128xbf16>, vector<128x128xbf16>, vector<8x128xf32> -> vector<8x128xf32>
    %c32 = arith.constant 32 : index
    %c0_24 = arith.constant 0 : index
    %71 = vector.load %arg3[%c32, %c0_24] : memref<40x128xf32, #tpu.memory_space<vmem>>, vector<1x128xf32>
    %72 = vector.broadcast %71 : vector<1x128xf32> to vector<8x128xf32>
    %73 = arith.addf %70, %72 : vector<8x128xf32>
    %74 = vector.extract_strided_slice %73 {offsets = [0, 0], sizes = [8, 8], strides = [1, 1]} : vector<8x128xf32> to vector<8x8xf32>
    %c0_25 = arith.constant 0 : index
    %c0_26 = arith.constant 0 : index
    %75 = vector.load %arg4[%c0_25, %c0_26] : memref<8x8xf32, #tpu.memory_space<vmem>>, vector<8x8xf32>
    tpu.vector_store %arg4[%c0_25, %c0_26], %74 {strides = array<i32>} : memref<8x8xf32, #tpu.memory_space<vmem>>, vector<8x8xf32>,
    return
  }
  func.func @transform_0(%arg0: i32) -> (i32, i32) {
    %c0_i32 = arith.constant 0 : i32
    %c0_i32_0 = arith.constant 0 : i32
    return %arg0, %c0_i32 : i32, i32
  }
  func.func @transform_1(%arg0: i32) -> (i32, i32) {
    %c0_i32 = arith.constant 0 : i32
    %c0_i32_0 = arith.constant 0 : i32
    %c0_i32_1 = arith.constant 0 : i32
    return %c0_i32, %c0_i32_0 : i32, i32
  }
  func.func @transform_2(%arg0: i32) -> (i32, i32) {
    %c0_i32 = arith.constant 0 : i32
    %c0_i32_0 = arith.constant 0 : i32
    %c0_i32_1 = arith.constant 0 : i32
    return %c0_i32, %c0_i32_0 : i32, i32
  }
  func.func @transform_3(%arg0: i32) -> (i32, i32) {
    %c0_i32 = arith.constant 0 : i32
    %c0_i32_0 = arith.constant 0 : i32
    return %arg0, %c0_i32 : i32, i32
  }
}

</mosaic_0001>

<llo_original>
// kernel: tpu_custom_call.1
$region0: #{tpu_custom_call.1}
  #allocation0 [shape = 'u32[]', space=smem, size = 0x4, offset = 0x4, fixed_abs, tag = 'smem constant byte address 0x4 - core index']
  #allocation1 [shape = 'u32[144,128]{1,0:T(1,128)}', space=vmem, size = 0x12000, scoped, tag = 'internal scratch']
  %s0 = inlined_call_operand.hbm [shape: f32[8,16], index: 0, kind: input, shape index: {}]
  %s1 = inlined_call_operand.hbm [shape: bf16[432,128], index: 1, kind: input, shape index: {}]
  %s2 = inlined_call_operand.hbm [shape: f32[40,128], index: 2, kind: input, shape index: {}]
  %s3 = inlined_call_operand.hbm [shape: f32[8,8], index: 3, kind: output, shape index: {}]
  %s4 = sld [smem:[#allocation0]]
  $region34: #{tpu_custom_call.1} parent=0
    _
  %s6 = ssub.s32 1, %s4
  %s7 = scalar_select 0, %s6, %s4
  $region1: #{tpu_custom_call.1} parent=0
    #allocation2 [shape = 'u8[4096]{0}', space=vmem, size = 0x1000, scoped, tag = 'input window, operand 0, single buffered']
    #allocation3 [shape = 's32[1]{0}', space=sflag, size = 0x4, scoped, tag = 'scoped memory for tpu_custom_call.1']
    #allocation4 [shape = 's32[1]{0}', space=sflag, size = 0x4, scoped, tag = 'scoped memory for tpu_custom_call.1']
    #allocation5 [shape = 'u8[110592]{0}', space=vmem, size = 0x1b000, scoped, tag = 'input window, operand 1, single buffered']
    #allocation6 [shape = 's32[1]{0}', space=sflag, size = 0x4, scoped, tag = 'scoped memory for tpu_custom_call.1']
    #allocation7 [shape = 'u8[20480]{0}', space=vmem, size = 0x5000, scoped, tag = 'input window, operand 2, single buffered']
    #allocation8 [shape = 'u8[4096]{0}', space=vmem, size = 0x1000, scoped, tag = 'output window, operand 0, single buffered']
    %8 = vsyncpa [#allocation3], 0
    %9 = vsyncpa [#allocation6], 0
    %10 = vsyncpa [#allocation4], 0
    // Predicated region
    $region2: #{tpu_custom_call.1} parent=1 // pred_check
      _
    $region3: #{tpu_custom_call.1} parent=1 // pred_check_branch
      %12 = sbr.rel (0) target = $region5
    $region4: #{tpu_custom_call.1} parent=1 // pred_region
      %s14 = ssub.s32 128, 128
      %15 = vsyncadd [#allocation3], %s14
      %s17 = sshll.u32 [#allocation2], 4
      %s18 = int_to_ptr.vmem [resolvable:$true] %s17
      %20 = dma.hbm_to_vmem [thread:$0]  %s0, 128, %s18, [#allocation3]
    $region5: #{tpu_custom_call.1} parent=1 // pred_fallthru
      _
    // Predicated region
    $region6: #{tpu_custom_call.1} parent=1 // pred_check
      _
    $region7: #{tpu_custom_call.1} parent=1 // pred_check_branch
      %22 = sbr.rel (0) target = $region9
    $region8: #{tpu_custom_call.1} parent=1 // pred_region
      %s24 = ssub.s32 3456, 3456
      %25 = vsyncadd [#allocation6], %s24
      %s26 = sshll.u32 [#allocation5], 4
      %s27 = int_to_ptr.vmem [resolvable:$true] %s26
      %32 = dma.hbm_to_vmem [thread:$0]  %s1, 3456, %s27, [#allocation6], 64, 64, 4
    $region9: #{tpu_custom_call.1} parent=1 // pred_fallthru
      _
    // Predicated region
    $region10: #{tpu_custom_call.1} parent=1 // pred_check
      _
    $region11: #{tpu_custom_call.1} parent=1 // pred_check_branch
      %34 = sbr.rel (0) target = $region13
    $region12: #{tpu_custom_call.1} parent=1 // pred_region
      %s36 = ssub.s32 640, 640
      %37 = vsyncadd [#allocation6], %s36
      %s38 = sshll.u32 [#allocation7], 4
      %s39 = int_to_ptr.vmem [resolvable:$true] %s38
      %44 = dma.hbm_to_vmem [thread:$0]  %s2, 640, %s39, [#allocation6], 128, 128, 8
    $region13: #{tpu_custom_call.1} parent=1 // pred_fallthru
      _
    // Predicated region
    $region14: #{tpu_custom_call.1} parent=1 // pred_check
      _
    $region15: #{tpu_custom_call.1} parent=1 // pred_check_branch
      %46 = sbr.rel (0) target = $region17
    $region16: #{tpu_custom_call.1} parent=1 // pred_region
      %47 = dma.done [#allocation3], 128
    $region17: #{tpu_custom_call.1} parent=1 // pred_fallthru
      _
    // Predicated region
    $region18: #{tpu_custom_call.1} parent=1 // pred_check
      _
    $region19: #{tpu_custom_call.1} parent=1 // pred_check_branch
      %49 = sbr.rel (0) target = $region21
    $region20: #{tpu_custom_call.1} parent=1 // pred_region
      %50 = dma.done [#allocation6], 3456
    $region21: #{tpu_custom_call.1} parent=1 // pred_fallthru
      _
    // Predicated region
    $region22: #{tpu_custom_call.1} parent=1 // pred_check
      _
    $region23: #{tpu_custom_call.1} parent=1 // pred_check_branch
      %52 = sbr.rel (0) target = $region25
    $region24: #{tpu_custom_call.1} parent=1 // pred_region
      %53 = dma.done [#allocation6], 640
    $region25: #{tpu_custom_call.1} parent=1 // pred_fallthru
      _
    %v55 = vld [vmem:[#allocation2] sm:$0xff]
    %v56 = vsub.f32 %v55, 1.0
    %v57 = vlaneseq
    %v58 = vand.u32 %v57, 127
    %vm59 = vcmp.ge.s32.totalorder %v58, 2
    %vm60 = vcmp.lt.s32.totalorder %v58, 6
    %vm61 = vmand %vm59, %vm60
    %63 = vset.pattern.permute.xlu0 7
    %64 = vperm.xlu0 %63, %v56
    %v65 = vpop.permute.xlu0 %64
    %v67 = vmul.f32 %v55, %v65
    %v68 = vsel %vm61, 1, 0
    %vm69 = vcmp.eq.s32.totalorder %v68, 1
    %v70 = vsel %vm69, %v67, %v55
    %v71 = vld [vmem:[#allocation5] sm:$0xf]
    %v72 = vld [vmem:[#allocation5 + $0x4] sm:$0xf]
    %v73 = vpack.c.bf16 %v70, %v70
    %v74 = vld [vmem:[#allocation7] sm:$0x1]
    %v75 = vlaneseq
    %v76 = vshrl.u32 %v75, 7
    %v77 = vsub.s32 0, %v76
    %v78 = vrot.slane %v74, %v77
    %v81 = vunpack.c.l.b16 %v71
    %v82 = vunpack.c.l.b16 %v72
    %v83 = vpack.c.b16 %v82, %v81
    %vm85 = vcmask 130048
    %v87 = vsel %vm85, %v73, 0
    %89 = vmatprep.subr.bf16.mxu0 0
    %90 = vmatpush1.bf16.msra.mxu0 %v83
    %91 = vmatprep.subr.bf16.mxu0 0
    %92 = vmatpush1.bf16.msra.mxu0 0
    %93 = vmatprep.subr.bf16.mxu0 0
    %94 = vmatpush1.bf16.msra.mxu0 0
    %95 = vmatprep.subr.bf16.mxu0 0
    %96 = vmatpush1.bf16.msra.mxu0 0
    %97 = vmatprep.subr.bf16.mxu0 0
    %98 = vmatpush1.bf16.msra.mxu0 0
    %99 = vmatprep.subr.bf16.mxu0 0
    %100 = vmatpush1.bf16.msra.mxu0 0
    %101 = vmatprep.subr.bf16.mxu0 0
    %102 = vmatpush1.bf16.msra.mxu0 0
    %103 = vmatprep.subr.bf16.mxu0 0
    %104 = vmatpush1.bf16.msra.mxu0 0
    %105 = vmatprep.subr.bf16.mxu0 0
    %106 = vmatpush1.bf16.msra.mxu0 0
    %107 = vmatprep.subr.bf16.mxu0 0
    %108 = vmatpush1.bf16.msra.mxu0 0
    %109 = vmatprep.subr.bf16.mxu0 0
    %110 = vmatpush1.bf16.msra.mxu0 0
    %111 = vmatprep.subr.bf16.mxu0 0
    %112 = vmatpush1.bf16.msra.mxu0 0
    %113 = vmatprep.subr.bf16.mxu0 0
    %114 = vmatpush1.bf16.msra.mxu0 0
    %115 = vmatprep.subr.bf16.mxu0 0
    %116 = vmatpush1.bf16.msra.mxu0 0
    %117 = vmatprep.subr.bf16.mxu0 0
    %118 = vmatpush1.bf16.msra.mxu0 0
    %119 = vmatprep.subr.bf16.mxu0 0
    %120 = vmatpush1.bf16.msra.mxu0 0
    %121 = vmatprep.mubr.bf16.mxu0 0
    %122 = vmatmul.mubr.bf16.gmra.mrb[0].mxu0 %v87
    %v123 = vpop.f32.mrb[0].mxu0
    %v124 = vadd.f32 %v78, %v123
    %v125 = vpop.f32.mrb[0].mxu0
    %v126 = vpop.f32.mrb[0].mxu0
    %v127 = vpop.f32.mrb[0].mxu0
    %128 = vdwg.mxu0
    %v129 = vmax.f32 %v124, 0.0
    %v130 = vand.u32 2147483647, %v124
    %v131 = vsub.f32 0.0, %v130
    %v132 = vmul.f32 %v131, 1.442695
    %v133 = vpow.pop %v132
    %v134 = vadd.f32 %v133, 1.0
    %v135 = vlog2.pop %v134
    %v136 = vmul.f32 %v135, 0.6931472
    %v137 = vmul.f32 -0.5, %v133
    %v138 = vadd.f32 %v137, 1.0
    %v139 = vmul.f32 %v138, %v133
    %v140 = vand.u32 2147483647, %v133
    %vm141 = vcmp.lt.f32.partialorder %v140, 0.0004427343
    %v142 = vsel %vm141, %v139, %v136
    %v143 = vadd.f32 %v129, %v142
    %v144 = vld [vmem:[#allocation5 + $0x8] sm:$0xf]
    %v145 = vld [vmem:[#allocation5 + $0xc] sm:$0xf]
    %v146 = vld [vmem:[#allocation5 + $0x10] sm:$0xf]
    %v147 = vld [vmem:[#allocation5 + $0x14] sm:$0xf]
    %v148 = vld [vmem:[#allocation5 + $0x18] sm:$0xf]
    %v149 = vld [vmem:[#allocation5 + $0x1c] sm:$0xf]
    %v150 = vld [vmem:[#allocation5 + $0x20] sm:$0xf]
    %v151 = vld [vmem:[#allocation5 + $0x24] sm:$0xf]
    %v152 = vld [vmem:[#allocation5 + $0x28] sm:$0xf]
    %v153 = vld [vmem:[#allocation5 + $0x2c] sm:$0xf]
    %v154 = vld [vmem:[#allocation5 + $0x30] sm:$0xf]
    %v155 = vld [vmem:[#allocation5 + $0x34] sm:$0xf]
    %v156 = vld [vmem:[#allocation5 + $0x38] sm:$0xf]
    %v157 = vld [vmem:[#allocation5 + $0x3c] sm:$0xf]
    %v158 = vld [vmem:[#allocation5 + $0x40] sm:$0xf]
    %v159 = vld [vmem:[#allocation5 + $0x44] sm:$0xf]
    %v160 = vpack.c.bf16 %v143, %v143
    %v161 = vld [vmem:[#allocation7 + $0x8] sm:$0x1]
    %v162 = vlaneseq
    %v163 = vshrl.u32 %v162, 7
    %v164 = vsub.s32 0, %v163
    %v165 = vrot.slane %v161, %v164
    %v182 = vunpack.c.l.b16 %v144
    %v183 = vunpack.c.l.b16 %v145
    %v184 = vunpack.c.l.b16 %v146
    %v185 = vunpack.c.l.b16 %v147
    %v186 = vunpack.c.l.b16 %v148
    %v187 = vunpack.c.l.b16 %v149
    %v188 = vunpack.c.l.b16 %v150
    %v189 = vunpack.c.l.b16 %v151
    %v190 = vunpack.c.l.b16 %v152
    %v191 = vunpack.c.l.b16 %v153
    %v192 = vunpack.c.l.b16 %v154
    %v193 = vunpack.c.l.b16 %v155
    %v194 = vunpack.c.l.b16 %v156
    %v195 = vunpack.c.l.b16 %v157
    %v196 = vunpack.c.l.b16 %v158
    %v197 = vunpack.c.l.b16 %v159
    %v198 = vpack.c.b16 %v183, %v182
    %v199 = vpack.c.b16 %v185, %v184
    %v200 = vpack.c.b16 %v187, %v186
    %v201 = vpack.c.b16 %v189, %v188
    %v202 = vpack.c.b16 %v191, %v190
    %v203 = vpack.c.b16 %v193, %v192
    %v204 = vpack.c.b16 %v195, %v194
    %v205 = vpack.c.b16 %v197, %v196
    %214 = vmatprep.subr.bf16.mxu0 0
    %215 = vmatpush1.bf16.msra.mxu0 %v198
    %216 = vmatprep.subr.bf16.mxu0 0
    %217 = vmatpush1.bf16.msra.mxu0 %v199
    %218 = vmatprep.subr.bf16.mxu0 0
    %219 = vmatpush1.bf16.msra.mxu0 %v200
    %220 = vmatprep.subr.bf16.mxu0 0
    %221 = vmatpush1.bf16.msra.mxu0 %v201
    %222 = vmatprep.subr.bf16.mxu0 0
    %223 = vmatpush1.bf16.msra.mxu0 %v202
    %224 = vmatprep.subr.bf16.mxu0 0
    %225 = vmatpush1.bf16.msra.mxu0 %v203
    %226 = vmatprep.subr.bf16.mxu0 0
    %227 = vmatpush1.bf16.msra.mxu0 %v204
    %228 = vmatprep.subr.bf16.mxu0 0
    %229 = vmatpush1.bf16.msra.mxu0 %v205
    %230 = vmatprep.subr.bf16.mxu0 0
    %231 = vmatpush1.bf16.msra.mxu0 0
    %232 = vmatprep.subr.bf16.mxu0 0
    %233 = vmatpush1.bf16.msra.mxu0 0
    %234 = vmatprep.subr.bf16.mxu0 0
    %235 = vmatpush1.bf16.msra.mxu0 0
    %236 = vmatprep.subr.bf16.mxu0 0
    %237 = vmatpush1.bf16.msra.mxu0 0
    %238 = vmatprep.subr.bf16.mxu0 0
    %239 = vmatpush1.bf16.msra.mxu0 0
    %240 = vmatprep.subr.bf16.mxu0 0
    %241 = vmatpush1.bf16.msra.mxu0 0
    %242 = vmatprep.subr.bf16.mxu0 0
    %243 = vmatpush1.bf16.msra.mxu0 0
    %244 = vmatprep.subr.bf16.mxu0 0
    %245 = vmatpush1.bf16.msra.mxu0 0
    %246 = vmatprep.mubr.bf16.mxu0 0
    %247 = vmatmul.mubr.bf16.gmra.mrb[0].mxu0 %v160
    %v248 = vpop.f32.mrb[0].mxu0
    %v249 = vadd.f32 %v165, %v248
    %v250 = vpop.f32.mrb[0].mxu0
    %v251 = vpop.f32.mrb[0].mxu0
    %v252 = vpop.f32.mrb[0].mxu0
    %253 = vdwg.mxu0
    %255 = vrot.lane.b32.xlu0 %v249, 96
    %v256 = vpop.permute.xlu0 %255
    %v258 = vmul.f32 %v249, %v256
    %259 = vrot.lane.b32.xlu0 %v249, 64
    %v260 = vpop.permute.xlu0 %259
    %v262 = vadd.f32 %v258, %v260
    %v263 = vld [vmem:[#allocation5 + $0x48] sm:$0xf]
    %v264 = vld [vmem:[#allocation5 + $0x4c] sm:$0xf]
    %v265 = vld [vmem:[#allocation5 + $0x50] sm:$0xf]
    %v266 = vld [vmem:[#allocation5 + $0x54] sm:$0xf]
    %v267 = vpack.c.bf16 %v262, %v262
    %v268 = vld [vmem:[#allocation7 + $0x10] sm:$0x1]
    %v269 = vlaneseq
    %v270 = vshrl.u32 %v269, 7
    %v271 = vsub.s32 0, %v270
    %v272 = vrot.slane %v268, %v271
    %v277 = vunpack.c.l.b16 %v263
    %v278 = vunpack.c.l.b16 %v264
    %v279 = vunpack.c.l.b16 %v265
    %v280 = vunpack.c.l.b16 %v266
    %v281 = vpack.c.b16 %v278, %v277
    %v282 = vpack.c.b16 %v280, %v279
    %vm285 = vcmask 261120
    %v287 = vsel %vm285, %v267, 0
    %289 = vmatprep.subr.bf16.mxu0 0
    %290 = vmatpush1.bf16.msra.mxu0 %v281
    %291 = vmatprep.subr.bf16.mxu0 0
    %292 = vmatpush1.bf16.msra.mxu0 %v282
    %293 = vmatprep.subr.bf16.mxu0 0
    %294 = vmatpush1.bf16.msra.mxu0 0
    %295 = vmatprep.subr.bf16.mxu0 0
    %296 = vmatpush1.bf16.msra.mxu0 0
    %297 = vmatprep.subr.bf16.mxu0 0
    %298 = vmatpush1.bf16.msra.mxu0 0
    %299 = vmatprep.subr.bf16.mxu0 0
    %300 = vmatpush1.bf16.msra.mxu0 0
    %301 = vmatprep.subr.bf16.mxu0 0
    %302 = vmatpush1.bf16.msra.mxu0 0
    %303 = vmatprep.subr.bf16.mxu0 0
    %304 = vmatpush1.bf16.msra.mxu0 0
    %305 = vmatprep.subr.bf16.mxu0 0
    %306 = vmatpush1.bf16.msra.mxu0 0
    %307 = vmatprep.subr.bf16.mxu0 0
    %308 = vmatpush1.bf16.msra.mxu0 0
    %309 = vmatprep.subr.bf16.mxu0 0
    %310 = vmatpush1.bf16.msra.mxu0 0
    %311 = vmatprep.subr.bf16.mxu0 0
    %312 = vmatpush1.bf16.msra.mxu0 0
    %313 = vmatprep.subr.bf16.mxu0 0
    %314 = vmatpush1.bf16.msra.mxu0 0
    %315 = vmatprep.subr.bf16.mxu0 0
    %316 = vmatpush1.bf16.msra.mxu0 0
    %317 = vmatprep.subr.bf16.mxu0 0
    %318 = vmatpush1.bf16.msra.mxu0 0
    %319 = vmatprep.subr.bf16.mxu0 0
    %320 = vmatpush1.bf16.msra.mxu0 0
    %321 = vmatprep.mubr.bf16.mxu0 0
    %322 = vmatmul.mubr.bf16.gmra.mrb[0].mxu0 %v287
    %v323 = vpop.f32.mrb[0].mxu0
    %v324 = vadd.f32 %v272, %v323
    %v325 = vpop.f32.mrb[0].mxu0
    %v326 = vpop.f32.mrb[0].mxu0
    %v327 = vpop.f32.mrb[0].mxu0
    %328 = vdwg.mxu0
    %v329 = vmax.f32 %v324, 0.0
    %v330 = vand.u32 2147483647, %v324
    %v331 = vsub.f32 0.0, %v330
    %v332 = vmul.f32 %v331, 1.442695
    %v333 = vpow.pop %v332
    %v334 = vadd.f32 %v333, 1.0
    %v335 = vlog2.pop %v334
    %v336 = vmul.f32 %v335, 0.6931472
    %v337 = vmul.f32 -0.5, %v333
    %v338 = vadd.f32 %v337, 1.0
    %v339 = vmul.f32 %v338, %v333
    %v340 = vand.u32 2147483647, %v333
    %vm341 = vcmp.lt.f32.partialorder %v340, 0.0004427343
    %v342 = vsel %vm341, %v339, %v336
    %v343 = vadd.f32 %v329, %v342
    %v344 = vld [vmem:[#allocation5 + $0x58] sm:$0xf]
    %v345 = vld [vmem:[#allocation5 + $0x5c] sm:$0xf]
    %v346 = vld [vmem:[#allocation5 + $0x60] sm:$0xf]
    %v347 = vld [vmem:[#allocation5 + $0x64] sm:$0xf]
    %v348 = vld [vmem:[#allocation5 + $0x68] sm:$0xf]
    %v349 = vld [vmem:[#allocation5 + $0x6c] sm:$0xf]
    %v350 = vld [vmem:[#allocation5 + $0x70] sm:$0xf]
    %v351 = vld [vmem:[#allocation5 + $0x74] sm:$0xf]
    %v352 = vld [vmem:[#allocation5 + $0x78] sm:$0xf]
    %v353 = vld [vmem:[#allocation5 + $0x7c] sm:$0xf]
    %v354 = vld [vmem:[#allocation5 + $0x80] sm:$0xf]
    %v355 = vld [vmem:[#allocation5 + $0x84] sm:$0xf]
    %v356 = vld [vmem:[#allocation5 + $0x88] sm:$0xf]
    %v357 = vld [vmem:[#allocation5 + $0x8c] sm:$0xf]
    %v358 = vld [vmem:[#allocation5 + $0x90] sm:$0xf]
    %v359 = vld [vmem:[#allocation5 + $0x94] sm:$0xf]
    %v360 = vpack.c.bf16 %v343, %v343
    %v361 = vld [vmem:[#allocation7 + $0x18] sm:$0x1]
    %v362 = vlaneseq
    %v363 = vshrl.u32 %v362, 7
    %v364 = vsub.s32 0, %v363
    %v365 = vrot.slane %v361, %v364
    %v382 = vunpack.c.l.b16 %v344
    %v383 = vunpack.c.l.b16 %v345
    %v384 = vunpack.c.l.b16 %v346
    %v385 = vunpack.c.l.b16 %v347
    %v386 = vunpack.c.l.b16 %v348
    %v387 = vunpack.c.l.b16 %v349
    %v388 = vunpack.c.l.b16 %v350
    %v389 = vunpack.c.l.b16 %v351
    %v390 = vunpack.c.l.b16 %v352
    %v391 = vunpack.c.l.b16 %v353
    %v392 = vunpack.c.l.b16 %v354
    %v393 = vunpack.c.l.b16 %v355
    %v394 = vunpack.c.l.b16 %v356
    %v395 = vunpack.c.l.b16 %v357
    %v396 = vunpack.c.l.b16 %v358
    %v397 = vunpack.c.l.b16 %v359
    %v398 = vpack.c.b16 %v383, %v382
    %v399 = vpack.c.b16 %v385, %v384
    %v400 = vpack.c.b16 %v387, %v386
    %v401 = vpack.c.b16 %v389, %v388
    %v402 = vpack.c.b16 %v391, %v390
    %v403 = vpack.c.b16 %v393, %v392
    %v404 = vpack.c.b16 %v395, %v394
    %v405 = vpack.c.b16 %v397, %v396
    %414 = vmatprep.subr.bf16.mxu0 0
    %415 = vmatpush1.bf16.msra.mxu0 %v398
    %416 = vmatprep.subr.bf16.mxu0 0
    %417 = vmatpush1.bf16.msra.mxu0 %v399
    %418 = vmatprep.subr.bf16.mxu0 0
    %419 = vmatpush1.bf16.msra.mxu0 %v400
    %420 = vmatprep.subr.bf16.mxu0 0
    %421 = vmatpush1.bf16.msra.mxu0 %v401
    %422 = vmatprep.subr.bf16.mxu0 0
    %423 = vmatpush1.bf16.msra.mxu0 %v402
    %424 = vmatprep.subr.bf16.mxu0 0
    %425 = vmatpush1.bf16.msra.mxu0 %v403
    %426 = vmatprep.subr.bf16.mxu0 0
    %427 = vmatpush1.bf16.msra.mxu0 %v404
    %428 = vmatprep.subr.bf16.mxu0 0
    %429 = vmatpush1.bf16.msra.mxu0 %v405
    %430 = vmatprep.subr.bf16.mxu0 0
    %431 = vmatpush1.bf16.msra.mxu0 0
    %432 = vmatprep.subr.bf16.mxu0 0
    %433 = vmatpush1.bf16.msra.mxu0 0
    %434 = vmatprep.subr.bf16.mxu0 0
    %435 = vmatpush1.bf16.msra.mxu0 0
    %436 = vmatprep.subr.bf16.mxu0 0
    %437 = vmatpush1.bf16.msra.mxu0 0
    %438 = vmatprep.subr.bf16.mxu0 0
    %439 = vmatpush1.bf16.msra.mxu0 0
    %440 = vmatprep.subr.bf16.mxu0 0
    %441 = vmatpush1.bf16.msra.mxu0 0
    %442 = vmatprep.subr.bf16.mxu0 0
    %443 = vmatpush1.bf16.msra.mxu0 0
    %444 = vmatprep.subr.bf16.mxu0 0
    %445 = vmatpush1.bf16.msra.mxu0 0
    %446 = vmatprep.mubr.bf16.mxu0 0
    %447 = vmatmul.mubr.bf16.gmra.mrb[0].mxu0 %v360
    %v448 = vpop.f32.mrb[0].mxu0
    %v449 = vadd.f32 %v365, %v448
    %v450 = vpop.f32.mrb[0].mxu0
    %v451 = vpop.f32.mrb[0].mxu0
    %v452 = vpop.f32.mrb[0].mxu0
    %453 = vdwg.mxu0
    %v454 = vmax.f32 %v449, 0.0
    %v455 = vand.u32 2147483647, %v449
    %v456 = vsub.f32 0.0, %v455
    %v457 = vmul.f32 %v456, 1.442695
    %v458 = vpow.pop %v457
    %v459 = vadd.f32 %v458, 1.0
    %v460 = vlog2.pop %v459
    %v461 = vmul.f32 %v460, 0.6931472
    %v462 = vmul.f32 -0.5, %v458
    %v463 = vadd.f32 %v462, 1.0
    %v464 = vmul.f32 %v463, %v458
    %v465 = vand.u32 2147483647, %v458
    %vm466 = vcmp.lt.f32.partialorder %v465, 0.0004427343
    %v467 = vsel %vm466, %v464, %v461
    %v468 = vadd.f32 %v454, %v467
    %v469 = vld [vmem:[#allocation5 + $0x98] sm:$0xf]
    %v470 = vld [vmem:[#allocation5 + $0x9c] sm:$0xf]
    %v471 = vld [vmem:[#allocation5 + $0xa0] sm:$0xf]
    %v472 = vld [vmem:[#allocation5 + $0xa4] sm:$0xf]
    %v473 = vld [vmem:[#allocation5 + $0xa8] sm:$0xf]
    %v474 = vld [vmem:[#allocation5 + $0xac] sm:$0xf]
    %v475 = vld [vmem:[#allocation5 + $0xb0] sm:$0xf]
    %v476 = vld [vmem:[#allocation5 + $0xb4] sm:$0xf]
    %v477 = vld [vmem:[#allocation5 + $0xb8] sm:$0xf]
    %v478 = vld [vmem:[#allocation5 + $0xbc] sm:$0xf]
    %v479 = vld [vmem:[#allocation5 + $0xc0] sm:$0xf]
    %v480 = vld [vmem:[#allocation5 + $0xc4] sm:$0xf]
    %v481 = vld [vmem:[#allocation5 + $0xc8] sm:$0xf]
    %v482 = vld [vmem:[#allocation5 + $0xcc] sm:$0xf]
    %v483 = vld [vmem:[#allocation5 + $0xd0] sm:$0xf]
    %v484 = vld [vmem:[#allocation5 + $0xd4] sm:$0xf]
    %v485 = vpack.c.bf16 %v468, %v468
    %v486 = vld [vmem:[#allocation7 + $0x20] sm:$0x1]
    %v487 = vlaneseq
    %v488 = vshrl.u32 %v487, 7
    %v489 = vsub.s32 0, %v488
    %v490 = vrot.slane %v486, %v489
    %v507 = vunpack.c.l.b16 %v469
    %v508 = vunpack.c.l.b16 %v470
    %v509 = vunpack.c.l.b16 %v471
    %v510 = vunpack.c.l.b16 %v472
    %v511 = vunpack.c.l.b16 %v473
    %v512 = vunpack.c.l.b16 %v474
    %v513 = vunpack.c.l.b16 %v475
    %v514 = vunpack.c.l.b16 %v476
    %v515 = vunpack.c.l.b16 %v477
    %v516 = vunpack.c.l.b16 %v478
    %v517 = vunpack.c.l.b16 %v479
    %v518 = vunpack.c.l.b16 %v480
    %v519 = vunpack.c.l.b16 %v481
    %v520 = vunpack.c.l.b16 %v482
    %v521 = vunpack.c.l.b16 %v483
    %v522 = vunpack.c.l.b16 %v484
    %v523 = vpack.c.b16 %v508, %v507
    %v524 = vpack.c.b16 %v510, %v509
    %v525 = vpack.c.b16 %v512, %v511
    %v526 = vpack.c.b16 %v514, %v513
    %v527 = vpack.c.b16 %v516, %v515
    %v528 = vpack.c.b16 %v518, %v517
    %v529 = vpack.c.b16 %v520, %v519
    %v530 = vpack.c.b16 %v522, %v521
    %539 = vmatprep.subr.bf16.mxu0 0
    %540 = vmatpush1.bf16.msra.mxu0 %v523
    %541 = vmatprep.subr.bf16.mxu0 0
    %542 = vmatpush1.bf16.msra.mxu0 %v524
    %543 = vmatprep.subr.bf16.mxu0 0
    %544 = vmatpush1.bf16.msra.mxu0 %v525
    %545 = vmatprep.subr.bf16.mxu0 0
    %546 = vmatpush1.bf16.msra.mxu0 %v526
    %547 = vmatprep.subr.bf16.mxu0 0
    %548 = vmatpush1.bf16.msra.mxu0 %v527
    %549 = vmatprep.subr.bf16.mxu0 0
    %550 = vmatpush1.bf16.msra.mxu0 %v528
    %551 = vmatprep.subr.bf16.mxu0 0
    %552 = vmatpush1.bf16.msra.mxu0 %v529
    %553 = vmatprep.subr.bf16.mxu0 0
    %554 = vmatpush1.bf16.msra.mxu0 %v530
    %555 = vmatprep.subr.bf16.mxu0 0
    %556 = vmatpush1.bf16.msra.mxu0 0
    %557 = vmatprep.subr.bf16.mxu0 0
    %558 = vmatpush1.bf16.msra.mxu0 0
    %559 = vmatprep.subr.bf16.mxu0 0
    %560 = vmatpush1.bf16.msra.mxu0 0
    %561 = vmatprep.subr.bf16.mxu0 0
    %562 = vmatpush1.bf16.msra.mxu0 0
    %563 = vmatprep.subr.bf16.mxu0 0
    %564 = vmatpush1.bf16.msra.mxu0 0
    %565 = vmatprep.subr.bf16.mxu0 0
    %566 = vmatpush1.bf16.msra.mxu0 0
    %567 = vmatprep.subr.bf16.mxu0 0
    %568 = vmatpush1.bf16.msra.mxu0 0
    %569 = vmatprep.subr.bf16.mxu0 0
    %570 = vmatpush1.bf16.msra.mxu0 0
    %571 = vmatprep.mubr.bf16.mxu0 0
    %572 = vmatmul.mubr.bf16.gmra.mrb[0].mxu0 %v485
    %v573 = vpop.f32.mrb[0].mxu0
    %v574 = vadd.f32 %v490, %v573
    %v575 = vpop.f32.mrb[0].mxu0
    %v576 = vpop.f32.mrb[0].mxu0
    %v577 = vpop.f32.mrb[0].mxu0
    %578 = vdwg.mxu0
    %vm579 = vcmask 64512
    %580 = vst.msk [vmem:[#allocation8] sm:$0xff] %vm579, %v574
    // Predicated region
    $region26: #{tpu_custom_call.1} parent=1 // pred_check
      _
    $region27: #{tpu_custom_call.1} parent=1 // pred_check_branch
      %582 = sbr.rel (0) target = $region29
    $region28: #{tpu_custom_call.1} parent=1 // pred_region
      %s584 = ssub.s32 128, 128
      %585 = vsyncadd [#allocation4], %s584
      %s587 = sshll.u32 [#allocation8], 4
      %s588 = int_to_ptr.vmem [resolvable:$true] %s587
      %590 = dma.vmem_to_hbm [thread:$0]  %s588, 128, %s3, [#allocation4]
    $region29: #{tpu_custom_call.1} parent=1 // pred_fallthru
      _
    // Predicated region
    $region30: #{tpu_custom_call.1} parent=1 // pred_check
      _
    $region31: #{tpu_custom_call.1} parent=1 // pred_check_branch
      %592 = sbr.rel (0) target = $region33
    $region32: #{tpu_custom_call.1} parent=1 // pred_region
      %593 = dma.done [#allocation4], 128
    $region33: #{tpu_custom_call.1} parent=1 // pred_fallthru
      _
    %594 = vsyncpa [#allocation3], 1
    %595 = vsyncpa [#allocation6], 1
    %596 = vsyncpa [#allocation4], 1

</llo_original>
